<compile_context>
chip_gen: v6e
topology: v6e:2x2x1
jax: 0.10.0
libtpu: 0.0.40
codegen_flags: <defaults>
</compile_context>

<pallas_src>
import functools
import math

import jax
import jax.numpy as jnp
from jax import lax
from jax.experimental import pallas as pl
from jax.experimental.pallas import tpu as pltpu


def _sdpa_kernel(q_ref, k_ref, v_ref, o_ref, p_ref, *, scale, causal, mxu_dtype):
    # q_ref: (1, tq, Dk)  query row tile for this (head*batch, q-tile) step
    # k_ref: (1, S,  Dk)  all keys for this head*batch (VMEM-resident across q tiles)
    # v_ref: (1, S,  Dk)  all values for this head*batch
    # o_ref: (1, tq, Dk)  attention-output tile
    # p_ref: (1, tq, S)   attention probabilities (full key width -> lane dense)
    q = q_ref[0] * scale          # fold 1/sqrt(d_k) into the small (tq, Dk) tile
    k = k_ref[0]
    v = v_ref[0]
    if mxu_dtype is not None:     # optional bf16 MXU path (f32 accumulation)
        q = q.astype(mxu_dtype)
        k = k.astype(mxu_dtype)

    # scores = q_scaled @ k^T  -- contract on d_k directly (no transpose copy).
    s = lax.dot_general(q, k, dimension_numbers=(((1,), (1,)), ((), ())),
                        preferred_element_type=jnp.float32)

    if causal:
        tq = s.shape[0]
        row = pl.program_id(1) * tq + lax.broadcasted_iota(jnp.int32, s.shape, 0)
        col = lax.broadcasted_iota(jnp.int32, s.shape, 1)
        s = jnp.where(row >= col, s, -jnp.inf)
        # TODO(synk): for long sequences, skip k-tiles strictly above the diagonal
        # (two-pass softmax) to recover ~2x of the masked-out MXU/VPU work.

    # Numerically-stable softmax over the key axis (exp -> EUP slot, one
    # reciprocal per row instead of a (tq, S) divide).
    m = jnp.max(s, axis=-1, keepdims=True)
    p = jnp.exp(s - m)
    l = jnp.sum(p, axis=-1, keepdims=True)
    p = p * pl.reciprocal(l, approx=False)

    # out = p @ v   (f32 accumulation on the MXU)
    pv_dtype = v.dtype if mxu_dtype is None else mxu_dtype
    o = jnp.dot(p.astype(pv_dtype), v.astype(pv_dtype),
                preferred_element_type=jnp.float32)

    o_ref[0] = o.astype(o_ref.dtype)
    p_ref[0] = p.astype(p_ref.dtype)


def _vmem_capacity_bytes():
    try:
        return int(pltpu.get_tpu_info().vmem_capacity_bytes)
    except Exception:
        return 64 * 1024 * 1024  # conservative fallback (v7x per-core VMEM)


def _per_step_vmem_bytes(tq, S, Dk, in_bytes, p_bytes, causal, kv_buffers):
    f32 = 4
    q_blk = 2 * tq * Dk * in_bytes                  # double-buffered Q tile
    kv_blk = kv_buffers * 2 * S * Dk * in_bytes     # K and V blocks
    o_blk = 2 * tq * Dk * in_bytes                  # double-buffered output tile
    p_blk = 2 * tq * S * p_bytes                    # double-buffered probs tile
    tmp = (3 if causal else 2) * tq * S * f32       # s/p (+ causal iota) temporaries
    return q_blk + kv_blk + o_blk + p_blk + tmp


def _pick_tiling(S, Dk, in_bytes, p_bytes, causal, vmem_cap):
    # Single-buffer K/V when they are large (their block index is constant along
    # the inner q axis, so double-buffering only wastes VMEM); keep the simple
    # default double-buffering when they are tiny.
    kv_bytes = 2 * S * Dk * in_bytes
    kv_buffers = 1 if kv_bytes > 2 * 1024 * 1024 else 2
    budget = vmem_cap // 2  # leave headroom for compiler scratch / spills
    candidates = [t for t in (256, 128, 64, 32, 16, 8) if S % t == 0] or [S]
    for tq in candidates:
        if _per_step_vmem_bytes(tq, S, Dk, in_bytes, p_bytes, causal,
                                kv_buffers) <= budget:
            return tq, kv_buffers
    return candidates[-1], 1


@functools.partial(jax.jit,
                   static_argnames=("causal", "tq", "probs_dtype", "mxu_dtype"))
def scaled_dot_product_attention(key, query, value, *, causal=False, tq=None,
                                 probs_dtype=None, mxu_dtype=None):
    """key/query/value: (n_heads, batch, seq_len, d_k).

    Returns (value_with_attention, attention_scores) like the PyTorch module.
    probs_dtype / mxu_dtype default to the input dtype (exact-module semantics);
    pass jnp.bfloat16 to trade precision for bandwidth / MXU throughput.
    """
    H, B, S, Dk = query.shape
    BH = H * B
    scale = 1.0 / math.sqrt(Dk)

    in_dtype = query.dtype
    p_dtype = in_dtype if probs_dtype is None else jnp.dtype(probs_dtype)
    in_bytes = jnp.dtype(in_dtype).itemsize
    p_bytes = jnp.dtype(p_dtype).itemsize

    qf = query.reshape(BH, S, Dk)
    kf = key.reshape(BH, S, Dk)
    vf = value.reshape(BH, S, Dk)

    vmem_cap = _vmem_capacity_bytes()
    auto_tq, kv_buffers = _pick_tiling(S, Dk, in_bytes, p_bytes, causal, vmem_cap)
    if tq is None:
        tq = auto_tq
    assert S % tq == 0, "q tile must divide seq_len"

    est_bytes = _per_step_vmem_bytes(tq, S, Dk, in_bytes, p_bytes, causal,
                                     kv_buffers)
    vmem_limit = min(max(int(est_bytes * 1.5), 32 * 1024 * 1024),
                     int(vmem_cap * 0.9))

    cost = pl.CostEstimate(
        flops=4 * BH * S * S * Dk,                       # two matmuls
        transcendentals=BH * S * S,                      # exp in softmax
        bytes_accessed=in_bytes * 4 * BH * S * Dk        # q, k, v in + out
                       + p_bytes * BH * S * S)           # probs out (dominant)

    kv_kwargs = {}
    if kv_buffers == 1:
        kv_kwargs = dict(pipeline_mode=pl.Buffered(1))
    k_spec = pl.BlockSpec((1, S, Dk), lambda b, i: (b, 0, 0), **kv_kwargs)
    v_spec = pl.BlockSpec((1, S, Dk), lambda b, i: (b, 0, 0), **kv_kwargs)

    out, probs = pl.pallas_call(
        functools.partial(_sdpa_kernel, scale=scale, causal=causal,
                          mxu_dtype=mxu_dtype),
        out_shape=(jax.ShapeDtypeStruct((BH, S, Dk), in_dtype),
                   jax.ShapeDtypeStruct((BH, S, S), p_dtype)),
        grid_spec=pltpu.PrefetchScalarGridSpec(
            num_scalar_prefetch=0,
            grid=(BH, S // tq),
            in_specs=[
                pl.BlockSpec((1, tq, Dk), lambda b, i: (b, i, 0)),  # Q row tile
                k_spec,                                             # K (per bh)
                v_spec,                                             # V (per bh)
            ],
            out_specs=[
                pl.BlockSpec((1, tq, Dk), lambda b, i: (b, i, 0)),  # attn output
                pl.BlockSpec((1, tq, S), lambda b, i: (b, i, 0)),   # attn probs
            ],
        ),
        compiler_params=pltpu.CompilerParams(
            # Megacore split only across heads*batch so K/V residency per bh holds.
            dimension_semantics=("parallel", "arbitrary"),
            vmem_limit_bytes=vmem_limit),
        cost_estimate=cost,
    )(qf, kf, vf)

    return out.reshape(H, B, S, Dk), probs.reshape(H, B, S, S)


def _reference(key, query, value, causal=False):
    dk = query.shape[-1]
    s = jnp.einsum("hbqd,hbkd->hbqk", query, key,
                   precision=lax.Precision.HIGHEST) / jnp.sqrt(jnp.float32(dk))
    if causal:
        tril = jnp.tril(jnp.ones((s.shape[-2], s.shape[-1]), dtype=bool))
        s = jnp.where(tril, s, -jnp.inf)
    p = jax.nn.softmax(s, axis=-1)
    o = jnp.einsum("hbqk,hbkd->hbqd", p, value, precision=lax.Precision.HIGHEST)
    return o, p


if __name__ == "__main__":
    # Small module-consistent shapes: n_heads=2, batch=2, seq=128, d_k=32
    # (i.e. d_model = n_heads * d_k = 64).
    n_heads, batch, seq_len, d_k = 2, 2, 128, 32
    shape = (n_heads, batch, seq_len, d_k)

    rng = jax.random.PRNGKey(0)
    kk, kq, kv = jax.random.split(rng, 3)
    key_t = jax.random.normal(kk, shape, dtype=jnp.float32)
    query_t = jax.random.normal(kq, shape, dtype=jnp.float32)
    value_t = jax.random.normal(kv, shape, dtype=jnp.float32)

    for causal in (False, True):
        out, probs = scaled_dot_product_attention(key_t, query_t, value_t,
                                                  causal=causal)
        out = jax.block_until_ready(out)
        probs = jax.block_until_ready(probs)

        out_ref, probs_ref = _reference(key_t, query_t, value_t, causal=causal)
        assert out.shape == shape
        assert probs.shape == (n_heads, batch, seq_len, seq_len)
        assert jnp.allclose(out, out_ref, atol=5e-5, rtol=5e-5), \
            f"output mismatch vs reference (causal={causal})"
        assert jnp.allclose(probs, probs_ref, atol=5e-5, rtol=5e-5), \
            f"probs mismatch vs reference (causal={causal})"

    print("KERNEL_OK")
</pallas_src>

<mosaic_0001>
module attributes {stable_mosaic.version = 11 : i64} {
  func.func @_sdpa_kernel(%arg0: i32, %arg1: i32, %arg2: memref<1x128x32xf32, #tpu.memory_space<vmem>>, %arg3: memref<1x128x32xf32, #tpu.memory_space<vmem>>, %arg4: memref<1x128x32xf32, #tpu.memory_space<vmem>>, %arg5: memref<1x128x32xf32, #tpu.memory_space<vmem>>, %arg6: memref<1x128x128xf32, #tpu.memory_space<vmem>>) attributes {dimension_semantics = [#tpu.dimension_semantics<parallel>, #tpu.dimension_semantics<arbitrary>], iteration_bounds = array<i64: 4, 1>, scalar_prefetch = 0 : i64, scratch_operands = 0 : i64, tpu.core_type = #tpu.core_type<tc>, window_params = [{transform_indices = @transform_0, window_bounds = array<i64: 1, 128, 32>}, {transform_indices = @transform_1, window_bounds = array<i64: 1, 128, 32>}, {transform_indices = @transform_2, window_bounds = array<i64: 1, 128, 32>}, {transform_indices = @transform_3, window_bounds = array<i64: 1, 128, 32>}, {transform_indices = @transform_4, window_bounds = array<i64: 1, 128, 128>}]} {
    %c0 = arith.constant 0 : index
    %c0_0 = arith.constant 0 : index
    %c0_1 = arith.constant 0 : index
    %0 = vector.load %arg2[%c0, %c0_0, %c0_1] : memref<1x128x32xf32, #tpu.memory_space<vmem>>, vector<1x128x32xf32>
    %1 = vector.shape_cast %0 : vector<1x128x32xf32> to vector<128x32xf32>
    %cst = arith.constant 0.176776692 : f32
    %2 = vector.broadcast %cst : f32 to vector<128x32xf32>
    %3 = arith.mulf %1, %2 : vector<128x32xf32>
    %c0_2 = arith.constant 0 : index
    %c0_3 = arith.constant 0 : index
    %c0_4 = arith.constant 0 : index
    %4 = vector.load %arg3[%c0_2, %c0_3, %c0_4] : memref<1x128x32xf32, #tpu.memory_space<vmem>>, vector<1x128x32xf32>
    %5 = vector.shape_cast %4 : vector<1x128x32xf32> to vector<128x32xf32>
    %c0_5 = arith.constant 0 : index
    %c0_6 = arith.constant 0 : index
    %c0_7 = arith.constant 0 : index
    %6 = vector.load %arg4[%c0_5, %c0_6, %c0_7] : memref<1x128x32xf32, #tpu.memory_space<vmem>>, vector<1x128x32xf32>
    %7 = vector.shape_cast %6 : vector<1x128x32xf32> to vector<128x32xf32>
    %cst_8 = arith.constant dense<0.000000e+00> : vector<128x128xf32>
    %8 = tpu.matmul %3, %5, %cst_8 {dimension_numbers = #tpu.dot_dimension_numbers<[1], [1], [0], [0], [0, 0, 1, 0], [], []>} : vector<128x32xf32>, vector<128x32xf32>, vector<128x128xf32> -> vector<128x128xf32>
    %cst_9 = arith.constant dense<0xFF800000> : vector<128xf32>
    %9 = vector.multi_reduction <maximumf>, %8, %cst_9 [1] : vector<128x128xf32> to vector<128xf32>
    %10 = vector.shape_cast %9 : vector<128xf32> to vector<128x1xf32>
    %11 = vector.broadcast %10 : vector<128x1xf32> to vector<128x128xf32>
    %12 = arith.subf %8, %11 : vector<128x128xf32>
    %13 = math.exp %12 : vector<128x128xf32>
    %cst_10 = arith.constant dense<0.000000e+00> : vector<128xf32>
    %14 = vector.multi_reduction <add>, %13, %cst_10 [1] : vector<128x128xf32> to vector<128xf32>
    %15 = vector.shape_cast %14 : vector<128xf32> to vector<128x1xf32>
    %16 = tpu.reciprocal %15 : vector<128x1xf32> -> vector<128x1xf32>
    %17 = vector.broadcast %16 : vector<128x1xf32> to vector<128x128xf32>
    %18 = arith.mulf %13, %17 : vector<128x128xf32>
    %cst_11 = arith.constant dense<0.000000e+00> : vector<128x32xf32>
    %19 = tpu.matmul %18, %7, %cst_11 {dimension_numbers = #tpu.dot_dimension_numbers<[1], [0], [0], [1], [0, 0, 1, 1], [], []>} : vector<128x128xf32>, vector<128x32xf32>, vector<128x32xf32> -> vector<128x32xf32>
    %c0_12 = arith.constant 0 : index
    %c0_13 = arith.constant 0 : index
    %c0_14 = arith.constant 0 : index
    %20 = vector.load %arg5[%c0_12, %c0_13, %c0_14] : memref<1x128x32xf32, #tpu.memory_space<vmem>>, vector<1x128x32xf32>
    %21 = vector.shape_cast %20 : vector<1x128x32xf32> to vector<128x32xf32>
    %22 = vector.shape_cast %19 : vector<128x32xf32> to vector<1x128x32xf32>
    tpu.vector_store %arg5[%c0_12, %c0_13, %c0_14], %22 {strides = array<i32>} : memref<1x128x32xf32, #tpu.memory_space<vmem>>, vector<1x128x32xf32>,
    %c0_15 = arith.constant 0 : index
    %c0_16 = arith.constant 0 : index
    %c0_17 = arith.constant 0 : index
    %23 = vector.load %arg6[%c0_15, %c0_16, %c0_17] : memref<1x128x128xf32, #tpu.memory_space<vmem>>, vector<1x128x128xf32>
    %24 = vector.shape_cast %23 : vector<1x128x128xf32> to vector<128x128xf32>
    %25 = vector.shape_cast %18 : vector<128x128xf32> to vector<1x128x128xf32>
    tpu.vector_store %arg6[%c0_15, %c0_16, %c0_17], %25 {strides = array<i32>} : memref<1x128x128xf32, #tpu.memory_space<vmem>>, vector<1x128x128xf32>,
    return
  }
  func.func @transform_0(%arg0: i32, %arg1: i32) -> (i32, i32, i32) {
    %c0_i32 = arith.constant 0 : i32
    %c0_i32_0 = arith.constant 0 : i32
    return %arg0, %arg1, %c0_i32 : i32, i32, i32
  }
  func.func @transform_1(%arg0: i32, %arg1: i32) -> (i32, i32, i32) {
    %c0_i32 = arith.constant 0 : i32
    %c0_i32_0 = arith.constant 0 : i32
    %c0_i32_1 = arith.constant 0 : i32
    return %arg0, %c0_i32, %c0_i32_0 : i32, i32, i32
  }
  func.func @transform_2(%arg0: i32, %arg1: i32) -> (i32, i32, i32) {
    %c0_i32 = arith.constant 0 : i32
    %c0_i32_0 = arith.constant 0 : i32
    %c0_i32_1 = arith.constant 0 : i32
    return %arg0, %c0_i32, %c0_i32_0 : i32, i32, i32
  }
  func.func @transform_3(%arg0: i32, %arg1: i32) -> (i32, i32, i32) {
    %c0_i32 = arith.constant 0 : i32
    %c0_i32_0 = arith.constant 0 : i32
    return %arg0, %arg1, %c0_i32 : i32, i32, i32
  }
  func.func @transform_4(%arg0: i32, %arg1: i32) -> (i32, i32, i32) {
    %c0_i32 = arith.constant 0 : i32
    %c0_i32_0 = arith.constant 0 : i32
    return %arg0, %arg1, %c0_i32 : i32, i32, i32
  }
}

</mosaic_0001>

<llo_original>
// kernel: scaled_dot_product_attention.1
$region0: #{scaled_dot_product_attention.1}
  #allocation0 [shape = 'u32[]', space=smem, size = 0x4, offset = 0x4, fixed_abs, tag = 'smem constant byte address 0x4 - core index']
  #allocation1 [shape = 'u32[144,128]{1,0:T(1,128)}', space=vmem, size = 0x12000, scoped, tag = 'internal scratch']
  %s0 = inlined_call_operand.vmem [shape: f32[4,128,32], index: 0, kind: input, shape index: {}]
  %s1 = inlined_call_operand.vmem [shape: f32[4,128,32], index: 1, kind: input, shape index: {}]
  %s2 = inlined_call_operand.vmem [shape: f32[4,128,32], index: 2, kind: input, shape index: {}]
  %s3 = inlined_call_operand.vmem [shape: f32[4,128,32], index: 3, kind: output, shape index: {0}]
  %s4 = inlined_call_operand.hbm [shape: f32[4,128,128], index: 4, kind: output, shape index: {1}]
  %5 = xla_tuple %s3, %s4
  %s6 = sld [smem:[#allocation0]]
  $region53: #{scaled_dot_product_attention.1} parent=0
    _
  %s8 = ssub.s32 1, %s6
  %s9 = scalar_select 0, %s8, %s6
  $region1: #{scaled_dot_product_attention.1} parent=0
    #allocation2 [shape = 'u8[131072]{0}', space=vmem, size = 0x20000, scoped, tag = 'output window, operand 1']
    #allocation3 [shape = 's32[2]{0}', space=sflag, size = 0x8, scoped, tag = 'scoped memory for scaled_dot_product_attention.1']
    %10 = vsyncpa [#allocation3], 0
    %s11 = scalar_lea.sflag [#allocation3], 1
    %12 = vsyncpa %s11, 0
    loop: start=0, step=1, limit=6
    $region2: #{scaled_dot_product_attention.1} parent=1 // loop_pre_header
      _
    $region3: #{scaled_dot_product_attention.1} parent=1 // loop_header
      %s14 = sphi 0, %s18
      %p15 = scmp.ge.s32.totalorder %s14, 6
      %s21 = sphi 0, %s33
      %s22 = sphi 0, %s29
      %s23 = sphi 0, %s21
      %s24 = sphi 0, %s22
      %s25 = sphi 0, %s23
      %s26 = sphi 0, %s24
      %s38 = sphi 0, %s40
      %s41 = sphi 0, %s38
      %s42 = sphi 0, %s41
      %s58 = sphi 0, %s42
      %s64 = sphi 0, %s66
      %s67 = sphi 0, %s64
      %s68 = sphi 0, %s67
      %s84 = sphi 0, %s68
      %s90 = sphi 0, %s92
      %s93 = sphi 0, %s90
      %s94 = sphi 0, %s93
      %s110 = sphi 0, %s94
      %s118 = sphi 0, %s120
      %s121 = sphi 0, %s118
      %s122 = sphi 0, %s121
      %s138 = sphi 0, %s122
      %s146 = sphi 0, %s148
      %s149 = sphi 0, %s146
      %s150 = sphi 0, %s149
      %s166 = sphi 0, %s150
    $region4: #{scaled_dot_product_attention.1} parent=1 // loop_header_branch
      %17 = sbr.rel (%p15) target = $region8
    $region5: #{scaled_dot_product_attention.1} parent=1 // loop_body
      %s19 = ssub.s32 %s14, 1
      %s20 = ssub.s32 %s14, 2
      %s27 = sadd.s32 1, %s22
      %p28 = scmp.ge.s32.totalorder %s27, 1
      %s29 = scalar_select %p28, 0, %s27
      %s30 = sadd.s32 1, %s21
      %s31 = scalar_select %p28, %s30, %s21
      %p32 = scmp.ge.s32.totalorder %s31, 4
      %s33 = scalar_select %p32, 0, %s31
      %s34 = ssub.s32 %s21, %s33
      %s35 = ssub.s32 %s22, %s29
      %s36 = sor.u32 %s34, %s35
      %p37 = scmp.eq.s32.totalorder %s36, 0
      %s39 = sadd.s32 %s38, 1
      %s40 = scalar_select %p37, %s38, %s39
      %p43 = pneg %p37
      %p44 = scmp.eq.s32.totalorder %s14, 3
      %p45 = por %p43, %p44
      %p46 = scmp.ne.s32.totalorder %s38, %s41
      %p47 = scmp.eq.s32.totalorder %s14, 0
      %p48 = por %p46, %p47
      %p49 = scmp.ne.s32.totalorder %s38, %s41
      %p50 = scmp.eq.s32.totalorder %s19, 3
      %p51 = por %p49, %p50
      %p52 = scmp.ne.s32.totalorder %s41, %s42
      %p53 = scmp.eq.s32.totalorder %s19, 0
      %p54 = por %p52, %p53
      %p55 = scmp.ne.s32.totalorder %s41, %s42
      %p56 = scmp.eq.s32.totalorder %s20, 3
      %p57 = por %p55, %p56
      %p59 = scmp.ne.s32.totalorder %s42, %s58
      %p60 = scmp.eq.s32.totalorder %s20, 0
      %p61 = por %p59, %p60
      %s62 = ssub.s32 %s21, %s33
      %p63 = scmp.eq.s32.totalorder %s62, 0
      %s65 = sadd.s32 %s64, 1
      %s66 = scalar_select %p63, %s64, %s65
      %p69 = pneg %p63
      %p70 = scmp.eq.s32.totalorder %s14, 3
      %p71 = por %p69, %p70
      %p72 = scmp.ne.s32.totalorder %s64, %s67
      %p73 = scmp.eq.s32.totalorder %s14, 0
      %p74 = por %p72, %p73
      %p75 = scmp.ne.s32.totalorder %s64, %s67
      %p76 = scmp.eq.s32.totalorder %s19, 3
      %p77 = por %p75, %p76
      %p78 = scmp.ne.s32.totalorder %s67, %s68
      %p79 = scmp.eq.s32.totalorder %s19, 0
      %p80 = por %p78, %p79
      %p81 = scmp.ne.s32.totalorder %s67, %s68
      %p82 = scmp.eq.s32.totalorder %s20, 3
      %p83 = por %p81, %p82
      %p85 = scmp.ne.s32.totalorder %s68, %s84
      %p86 = scmp.eq.s32.totalorder %s20, 0
      %p87 = por %p85, %p86
      %s88 = ssub.s32 %s21, %s33
      %p89 = scmp.eq.s32.totalorder %s88, 0
      %s91 = sadd.s32 %s90, 1
      %s92 = scalar_select %p89, %s90, %s91
      %p95 = pneg %p89
      %p96 = scmp.eq.s32.totalorder %s14, 3
      %p97 = por %p95, %p96
      %p98 = scmp.ne.s32.totalorder %s90, %s93
      %p99 = scmp.eq.s32.totalorder %s14, 0
      %p100 = por %p98, %p99
      %p101 = scmp.ne.s32.totalorder %s90, %s93
      %p102 = scmp.eq.s32.totalorder %s19, 3
      %p103 = por %p101, %p102
      %p104 = scmp.ne.s32.totalorder %s93, %s94
      %p105 = scmp.eq.s32.totalorder %s19, 0
      %p106 = por %p104, %p105
      %p107 = scmp.ne.s32.totalorder %s93, %s94
      %p108 = scmp.eq.s32.totalorder %s20, 3
      %p109 = por %p107, %p108
      %p111 = scmp.ne.s32.totalorder %s94, %s110
      %p112 = scmp.eq.s32.totalorder %s20, 0
      %p113 = por %p111, %p112
      %s114 = ssub.s32 %s21, %s33
      %s115 = ssub.s32 %s22, %s29
      %s116 = sor.u32 %s114, %s115
      %p117 = scmp.eq.s32.totalorder %s116, 0
      %s119 = sadd.s32 %s118, 1
      %s120 = scalar_select %p117, %s118, %s119
      %p123 = pneg %p117
      %p124 = scmp.eq.s32.totalorder %s14, 3
      %p125 = por %p123, %p124
      %p126 = scmp.ne.s32.totalorder %s118, %s121
      %p127 = scmp.eq.s32.totalorder %s14, 0
      %p128 = por %p126, %p127
      %p129 = scmp.ne.s32.totalorder %s118, %s121
      %p130 = scmp.eq.s32.totalorder %s19, 3
      %p131 = por %p129, %p130
      %p132 = scmp.ne.s32.totalorder %s121, %s122
      %p133 = scmp.eq.s32.totalorder %s19, 0
      %p134 = por %p132, %p133
      %p135 = scmp.ne.s32.totalorder %s121, %s122
      %p136 = scmp.eq.s32.totalorder %s20, 3
      %p137 = por %p135, %p136
      %p139 = scmp.ne.s32.totalorder %s122, %s138
      %p140 = scmp.eq.s32.totalorder %s20, 0
      %p141 = por %p139, %p140
      %s142 = ssub.s32 %s21, %s33
      %s143 = ssub.s32 %s22, %s29
      %s144 = sor.u32 %s142, %s143
      %p145 = scmp.eq.s32.totalorder %s144, 0
      %s147 = sadd.s32 %s146, 1
      %s148 = scalar_select %p145, %s146, %s147
      %p151 = pneg %p145
      %p152 = scmp.eq.s32.totalorder %s14, 3
      %p153 = por %p151, %p152
      %p154 = scmp.ne.s32.totalorder %s146, %s149
      %p155 = scmp.eq.s32.totalorder %s14, 0
      %p156 = por %p154, %p155
      %p157 = scmp.ne.s32.totalorder %s146, %s149
      %p158 = scmp.eq.s32.totalorder %s19, 3
      %p159 = por %p157, %p158
      %p160 = scmp.ne.s32.totalorder %s149, %s150
      %p161 = scmp.eq.s32.totalorder %s19, 0
      %p162 = por %p160, %p161
      %p163 = scmp.ne.s32.totalorder %s149, %s150
      %p164 = scmp.eq.s32.totalorder %s20, 3
      %p165 = por %p163, %p164
      %p167 = scmp.ne.s32.totalorder %s150, %s166
      %p168 = scmp.eq.s32.totalorder %s20, 0
      %p169 = por %p167, %p168
      %p170 = scmp.le.s32.totalorder 1, %s14
      %p171 = scmp.lt.s32.totalorder %s14, 5
      %p172 = pnand %p170, %p171
      %p173 = pneg %p172
      // Predicated region
      $region9: #{scaled_dot_product_attention.1} parent=5 // pred_check
        _
      $region10: #{scaled_dot_product_attention.1} parent=5 // pred_check_branch
        %175 = sbr.rel (%p172) target = $region12
      $region11: #{scaled_dot_product_attention.1} parent=5 // pred_region
        %s176 = ssub.s32 %s14, 1
      $region12: #{scaled_dot_product_attention.1} parent=5 // pred_fallthru
        _
      %p177 = scmp.lt.s32.totalorder %s14, 4
      // Predicated region
      $region13: #{scaled_dot_product_attention.1} parent=5 // pred_check
        %p178 = pneg %p177
      $region14: #{scaled_dot_product_attention.1} parent=5 // pred_check_branch
        %180 = sbr.rel (%p178) target = $region16
      $region15: #{scaled_dot_product_attention.1} parent=5 // pred_region
        // Predicated region
        $region17: #{scaled_dot_product_attention.1} parent=15 // pred_check
          %p181 = pneg %p48
        $region18: #{scaled_dot_product_attention.1} parent=15 // pred_check_branch
          %183 = sbr.rel (%p181) target = $region20
        $region19: #{scaled_dot_product_attention.1} parent=15 // pred_region
          %s184 = smul.u32 16, %s22
          %p185 = scmp.lt.s32.totalorder %s21, 3
          %s186 = scalar_select %p185, %s21, 3
          %p187 = scmp.lt.s32.totalorder %s184, 15
          %s188 = scalar_select %p187, %s184, 15
          %s189 = smul.addr %s186, 16
          %s190 = sadd.s32 %s188, %s189
          %s191 = smul.addr %s190, 8
          %s192 = scalar_lea.vmem %s0, %s191
          %s193 = smul.u32 16, %s22
        $region20: #{scaled_dot_product_attention.1} parent=15 // pred_fallthru
          _
        // Predicated region
        $region21: #{scaled_dot_product_attention.1} parent=15 // pred_check
          %p194 = pneg %p74
        $region22: #{scaled_dot_product_attention.1} parent=15 // pred_check_branch
          %196 = sbr.rel (%p194) target = $region24
        $region23: #{scaled_dot_product_attention.1} parent=15 // pred_region
          %p197 = scmp.lt.s32.totalorder %s21, 3
          %s198 = scalar_select %p197, %s21, 3
          %s199 = smul.addr %s198, 16
          %s200 = smul.addr %s199, 8
          %s201 = scalar_lea.vmem %s1, %s200
        $region24: #{scaled_dot_product_attention.1} parent=15 // pred_fallthru
          _
        // Predicated region
        $region25: #{scaled_dot_product_attention.1} parent=15 // pred_check
          %p202 = pneg %p100
        $region26: #{scaled_dot_product_attention.1} parent=15 // pred_check_branch
          %204 = sbr.rel (%p202) target = $region28
        $region27: #{scaled_dot_product_attention.1} parent=15 // pred_region
          %p205 = scmp.lt.s32.totalorder %s21, 3
          %s206 = scalar_select %p205, %s21, 3
          %s207 = smul.addr %s206, 16
          %s208 = smul.addr %s207, 8
          %s209 = scalar_lea.vmem %s2, %s208
        $region28: #{scaled_dot_product_attention.1} parent=15 // pred_fallthru
          _
      $region16: #{scaled_dot_product_attention.1} parent=5 // pred_fallthru
        _
      %p210 = scmp.le.s32.totalorder 1, %s14
      %p211 = scmp.lt.s32.totalorder %s14, 5
      %p212 = pnand %p210, %p211
      %p213 = pneg %p212
      // Predicated region
      $region29: #{scaled_dot_product_attention.1} parent=5 // pred_check
        _
      $region30: #{scaled_dot_product_attention.1} parent=5 // pred_check_branch
        %215 = sbr.rel (%p212) target = $region32
      $region31: #{scaled_dot_product_attention.1} parent=5 // pred_region
        %s216 = ssub.s32 %s14, 1
        %s217 = smul.u32 16, %s24
        %p218 = scmp.lt.s32.totalorder %s23, 3
        %s219 = scalar_select %p218, %s23, 3
        %p220 = scmp.lt.s32.totalorder %s217, 15
        %s221 = scalar_select %p220, %s217, 15
        %s222 = smul.addr %s219, 16
        %s223 = sadd.s32 %s221, %s222
        %s224 = smul.addr %s223, 8
        %s225 = scalar_lea.vmem %s0, %s224
        %p226 = pneg %p54
        %p227 = pneg %p51
        %p228 = scmp.lt.s32.totalorder %s23, 3
        %s229 = scalar_select %p228, %s23, 3
        %s230 = smul.addr %s229, 16
        %s231 = smul.addr %s230, 8
        %s232 = scalar_lea.vmem %s1, %s231
        %p233 = pneg %p80
        %p234 = pneg %p77
        %p235 = scmp.lt.s32.totalorder %s23, 3
        %s236 = scalar_select %p235, %s23, 3
        %s237 = smul.addr %s236, 16
        %s238 = smul.addr %s237, 8
        %s239 = scalar_lea.vmem %s2, %s238
        %p240 = pneg %p106
        %p241 = pneg %p103
        %p242 = pneg %p134
        %p243 = pneg %p131
        %s244 = smul.u32 16, %s24
        %p245 = scmp.lt.s32.totalorder %s23, 3
        %s246 = scalar_select %p245, %s23, 3
        %p247 = scmp.lt.s32.totalorder %s244, 15
        %s248 = scalar_select %p247, %s244, 15
        %s249 = smul.addr %s246, 16
        %s250 = sadd.s32 %s248, %s249
        %s251 = smul.addr %s250, 8
        %s252 = scalar_lea.vmem %s3, %s251
        %p253 = pneg %p162
        %p254 = pneg %p159
        %s255 = sand.u32 %s149, 1
        %s256 = scalar_lea.sflag [#allocation3], %s255
        %s257 = sand.u32 %s149, 1
        %s258 = smul.addr %s257, 128
        %s259 = scalar_lea.vmem [#allocation2], %s258
        %s260 = smul.u32 16, %s24
        %p261 = scmp.lt.s32.totalorder %s23, 3
        %s262 = scalar_select %p261, %s23, 3
        %p263 = scmp.lt.s32.totalorder %s260, 15
        %s264 = scalar_select %p263, %s260, 15
        %s265 = smul.addr %s262, 16
        %s266 = sadd.s32 %s264, %s265
        %s267 = smul.addr %s266, 8
        %s268 = scalar_lea.vmem %s0, %s267
        %s269 = smul.u32 16, %s24
        %p270 = scmp.lt.s32.totalorder %s23, 3
        %s271 = scalar_select %p270, %s23, 3
        %s272 = smul.addr %s271, 16
        %s273 = smul.addr %s272, 8
        %s274 = scalar_lea.vmem %s1, %s273
        %p275 = scmp.lt.s32.totalorder %s23, 3
        %s276 = scalar_select %p275, %s23, 3
        %s277 = smul.addr %s276, 16
        %s278 = smul.addr %s277, 8
        %s279 = scalar_lea.vmem %s2, %s278
        %s280 = smul.u32 16, %s24
        %p281 = scmp.lt.s32.totalorder %s23, 3
        %s282 = scalar_select %p281, %s23, 3
        %p283 = scmp.lt.s32.totalorder %s280, 15
        %s284 = scalar_select %p283, %s280, 15
        %s285 = smul.addr %s282, 16
        %s286 = sadd.s32 %s284, %s285
        %s287 = smul.addr %s286, 8
        %s288 = scalar_lea.vmem %s3, %s287
        %s289 = smul.u32 16, %s24
        %s290 = smul.u32 16, %s24
        %v291 = vld [vmem:[%s268] sm:$0xff]
        %v292 = vld [vmem:[%s268 + $0x8] sm:$0xff]
        %v293 = vld [vmem:[%s268 + $0x10] sm:$0xff]
        %v294 = vld [vmem:[%s268 + $0x18] sm:$0xff]
        %v295 = vld [vmem:[%s268 + $0x20] sm:$0xff]
        %v296 = vld [vmem:[%s268 + $0x28] sm:$0xff]
        %v297 = vld [vmem:[%s268 + $0x30] sm:$0xff]
        %v298 = vld [vmem:[%s268 + $0x38] sm:$0xff]
        %v299 = vld [vmem:[%s268 + $0x40] sm:$0xff]
        %v300 = vld [vmem:[%s268 + $0x48] sm:$0xff]
        %v301 = vld [vmem:[%s268 + $0x50] sm:$0xff]
        %v302 = vld [vmem:[%s268 + $0x58] sm:$0xff]
        %v303 = vld [vmem:[%s268 + $0x60] sm:$0xff]
        %v304 = vld [vmem:[%s268 + $0x68] sm:$0xff]
        %v305 = vld [vmem:[%s268 + $0x70] sm:$0xff]
        %v306 = vld [vmem:[%s268 + $0x78] sm:$0xff]
        %v307 = vmul.f32 %v291, 0.17677669
        %v308 = vmul.f32 %v292, 0.17677669
        %v309 = vmul.f32 %v293, 0.17677669
        %v310 = vmul.f32 %v294, 0.17677669
        %v311 = vmul.f32 %v295, 0.17677669
        %v312 = vmul.f32 %v296, 0.17677669
        %v313 = vmul.f32 %v297, 0.17677669
        %v314 = vmul.f32 %v298, 0.17677669
        %v315 = vmul.f32 %v299, 0.17677669
        %v316 = vmul.f32 %v300, 0.17677669
        %v317 = vmul.f32 %v301, 0.17677669
        %v318 = vmul.f32 %v302, 0.17677669
        %v319 = vmul.f32 %v303, 0.17677669
        %v320 = vmul.f32 %v304, 0.17677669
        %v321 = vmul.f32 %v305, 0.17677669
        %v322 = vmul.f32 %v306, 0.17677669
        %v323 = vld [vmem:[%s274] sm:$0xff]
        %v324 = vld [vmem:[%s274 + $0x8] sm:$0xff]
        %v325 = vld [vmem:[%s274 + $0x10] sm:$0xff]
        %v326 = vld [vmem:[%s274 + $0x18] sm:$0xff]
        %v327 = vld [vmem:[%s274 + $0x20] sm:$0xff]
        %v328 = vld [vmem:[%s274 + $0x28] sm:$0xff]
        %v329 = vld [vmem:[%s274 + $0x30] sm:$0xff]
        %v330 = vld [vmem:[%s274 + $0x38] sm:$0xff]
        %v331 = vld [vmem:[%s274 + $0x40] sm:$0xff]
        %v332 = vld [vmem:[%s274 + $0x48] sm:$0xff]
        %v333 = vld [vmem:[%s274 + $0x50] sm:$0xff]
        %v334 = vld [vmem:[%s274 + $0x58] sm:$0xff]
        %v335 = vld [vmem:[%s274 + $0x60] sm:$0xff]
        %v336 = vld [vmem:[%s274 + $0x68] sm:$0xff]
        %v337 = vld [vmem:[%s274 + $0x70] sm:$0xff]
        %v338 = vld [vmem:[%s274 + $0x78] sm:$0xff]
        %v339 = vld [vmem:[%s279] sm:$0xff]
        %v340 = vld [vmem:[%s279 + $0x8] sm:$0xff]
        %v341 = vld [vmem:[%s279 + $0x10] sm:$0xff]
        %v342 = vld [vmem:[%s279 + $0x18] sm:$0xff]
        %v343 = vld [vmem:[%s279 + $0x20] sm:$0xff]
        %v344 = vld [vmem:[%s279 + $0x28] sm:$0xff]
        %v345 = vld [vmem:[%s279 + $0x30] sm:$0xff]
        %v346 = vld [vmem:[%s279 + $0x38] sm:$0xff]
        %v347 = vld [vmem:[%s279 + $0x40] sm:$0xff]
        %v348 = vld [vmem:[%s279 + $0x48] sm:$0xff]
        %v349 = vld [vmem:[%s279 + $0x50] sm:$0xff]
        %v350 = vld [vmem:[%s279 + $0x58] sm:$0xff]
        %v351 = vld [vmem:[%s279 + $0x60] sm:$0xff]
        %v352 = vld [vmem:[%s279 + $0x68] sm:$0xff]
        %v353 = vld [vmem:[%s279 + $0x70] sm:$0xff]
        %v354 = vld [vmem:[%s279 + $0x78] sm:$0xff]
        %vm355 = vcmask 261120
        %v357 = vsel %vm355, %v307, 0
        %v360 = vsel %vm355, %v308, 0
        %v363 = vsel %vm355, %v309, 0
        %v366 = vsel %vm355, %v310, 0
        %v369 = vsel %vm355, %v311, 0
        %v372 = vsel %vm355, %v312, 0
        %v375 = vsel %vm355, %v313, 0
        %v378 = vsel %vm355, %v314, 0
        %v381 = vsel %vm355, %v315, 0
        %v384 = vsel %vm355, %v316, 0
        %v387 = vsel %vm355, %v317, 0
        %v390 = vsel %vm355, %v318, 0
        %v393 = vsel %vm355, %v319, 0
        %v396 = vsel %vm355, %v320, 0
        %v399 = vsel %vm355, %v321, 0
        %v402 = vsel %vm355, %v322, 0
        %v405 = vsel %vm355, %v323, 0
        %v408 = vsel %vm355, %v324, 0
        %v411 = vsel %vm355, %v325, 0
        %v414 = vsel %vm355, %v326, 0
        %v417 = vsel %vm355, %v327, 0
        %v420 = vsel %vm355, %v328, 0
        %v423 = vsel %vm355, %v329, 0
        %v426 = vsel %vm355, %v330, 0
        %v429 = vsel %vm355, %v331, 0
        %v432 = vsel %vm355, %v332, 0
        %v435 = vsel %vm355, %v333, 0
        %v438 = vsel %vm355, %v334, 0
        %v441 = vsel %vm355, %v335, 0
        %v444 = vsel %vm355, %v336, 0
        %v447 = vsel %vm355, %v337, 0
        %v450 = vsel %vm355, %v338, 0
        %452 = vmatprep.subr.mxu0 0.0
        %453 = vmatpush1.xpose.msra.mxu0 %v450
        %454 = vmatprep.subr.mxu0 0.0
        %455 = vmatpush1.xpose.msra.mxu0 %v447
        %456 = vmatprep.subr.mxu0 0.0
        %457 = vmatpush1.xpose.msra.mxu0 %v444
        %458 = vmatprep.subr.mxu0 0.0
        %459 = vmatpush1.xpose.msra.mxu0 %v441
        %460 = vmatprep.subr.mxu0 0.0
        %461 = vmatpush1.xpose.msra.mxu0 %v438
        %462 = vmatprep.subr.mxu0 0.0
        %463 = vmatpush1.xpose.msra.mxu0 %v435
        %464 = vmatprep.subr.mxu0 0.0
        %465 = vmatpush1.xpose.msra.mxu0 %v432
        %466 = vmatprep.subr.mxu0 0.0
        %467 = vmatpush1.xpose.msra.mxu0 %v429
        %468 = vmatprep.subr.mxu0 0.0
        %469 = vmatpush1.xpose.msra.mxu0 %v426
        %470 = vmatprep.subr.mxu0 0.0
        %471 = vmatpush1.xpose.msra.mxu0 %v423
        %472 = vmatprep.subr.mxu0 0.0
        %473 = vmatpush1.xpose.msra.mxu0 %v420
        %474 = vmatprep.subr.mxu0 0.0
        %475 = vmatpush1.xpose.msra.mxu0 %v417
        %476 = vmatprep.subr.mxu0 0.0
        %477 = vmatpush1.xpose.msra.mxu0 %v414
        %478 = vmatprep.subr.mxu0 0.0
        %479 = vmatpush1.xpose.msra.mxu0 %v411
        %480 = vmatprep.subr.mxu0 0.0
        %481 = vmatpush1.xpose.msra.mxu0 %v408
        %482 = vmatprep.subr.mxu0 0.0
        %483 = vmatpush1.xpose.msra.mxu0 %v405
        %484 = vmatprep.subr.mxu0 0.0
        %485 = vmatpush2.xpose.msra.mxu0 0.0
        %486 = vmatprep.subr.mxu0 0.0
        %487 = vmatpush2.xpose.msra.mxu0 0.0
        %488 = vmatprep.subr.mxu0 0.0
        %489 = vmatpush2.xpose.msra.mxu0 0.0
        %490 = vmatprep.subr.mxu0 0.0
        %491 = vmatpush2.xpose.msra.mxu0 0.0
        %492 = vmatprep.subr.mxu0 0.0
        %493 = vmatpush2.xpose.msra.mxu0 0.0
        %494 = vmatprep.subr.mxu0 0.0
        %495 = vmatpush2.xpose.msra.mxu0 0.0
        %496 = vmatprep.subr.mxu0 0.0
        %497 = vmatpush2.xpose.msra.mxu0 0.0
        %498 = vmatprep.subr.mxu0 0.0
        %499 = vmatpush2.xpose.msra.mxu0 0.0
        %500 = vmatprep.subr.mxu0 0.0
        %501 = vmatpush2.xpose.msra.mxu0 0.0
        %502 = vmatprep.subr.mxu0 0.0
        %503 = vmatpush2.xpose.msra.mxu0 0.0
        %504 = vmatprep.subr.mxu0 0.0
        %505 = vmatpush2.xpose.msra.mxu0 0.0
        %506 = vmatprep.subr.mxu0 0.0
        %507 = vmatpush2.xpose.msra.mxu0 0.0
        %508 = vmatprep.subr.mxu0 0.0
        %509 = vmatpush2.xpose.msra.mxu0 0.0
        %510 = vmatprep.subr.mxu0 0.0
        %511 = vmatpush2.xpose.msra.mxu0 0.0
        %512 = vmatprep.subr.mxu0 0.0
        %513 = vmatpush2.xpose.msra.mxu0 0.0
        %514 = vmatprep.subr.mxu0 0.0
        %515 = vmatpush2.xpose.msra.mxu0 0.0
        %516 = vmatprep.mubr.f32.mxu0 0.0
        %517 = vmatmul.mubr.f32.gmra.mxu0 %v357
        %v518 = vpop.f32.mrf.mxu0
        %v519 = vadd.f32 0.0, %v518
        %v520 = vpop.f32.mrf.mxu0
        %521 = vmatprep.mubr.f32.mxu0 0.0
        %522 = vmatmul.mubr.f32.gmra.mxu0 %v360
        %v523 = vpop.f32.mrf.mxu0
        %v524 = vadd.f32 0.0, %v523
        %v525 = vpop.f32.mrf.mxu0
        %526 = vmatprep.mubr.f32.mxu0 0.0
        %527 = vmatmul.mubr.f32.gmra.mxu0 %v363
        %v528 = vpop.f32.mrf.mxu0
        %v529 = vadd.f32 0.0, %v528
        %v530 = vpop.f32.mrf.mxu0
        %531 = vmatprep.mubr.f32.mxu0 0.0
        %532 = vmatmul.mubr.f32.gmra.mxu0 %v366
        %v533 = vpop.f32.mrf.mxu0
        %v534 = vadd.f32 0.0, %v533
        %v535 = vpop.f32.mrf.mxu0
        %536 = vmatprep.mubr.f32.mxu0 0.0
        %537 = vmatmul.mubr.f32.gmra.mxu0 %v369
        %v538 = vpop.f32.mrf.mxu0
        %v539 = vadd.f32 0.0, %v538
        %v540 = vpop.f32.mrf.mxu0
        %541 = vmatprep.mubr.f32.mxu0 0.0
        %542 = vmatmul.mubr.f32.gmra.mxu0 %v372
        %v543 = vpop.f32.mrf.mxu0
        %v544 = vadd.f32 0.0, %v543
        %v545 = vpop.f32.mrf.mxu0
        %546 = vmatprep.mubr.f32.mxu0 0.0
        %547 = vmatmul.mubr.f32.gmra.mxu0 %v375
        %v548 = vpop.f32.mrf.mxu0
        %v549 = vadd.f32 0.0, %v548
        %v550 = vpop.f32.mrf.mxu0
        %551 = vmatprep.mubr.f32.mxu0 0.0
        %552 = vmatmul.mubr.f32.gmra.mxu0 %v378
        %v553 = vpop.f32.mrf.mxu0
        %v554 = vadd.f32 0.0, %v553
        %v555 = vpop.f32.mrf.mxu0
        %556 = vmatprep.mubr.f32.mxu0 0.0
        %557 = vmatmul.mubr.f32.gmra.mxu0 %v381
        %v558 = vpop.f32.mrf.mxu0
        %v559 = vadd.f32 0.0, %v558
        %v560 = vpop.f32.mrf.mxu0
        %561 = vmatprep.mubr.f32.mxu0 0.0
        %562 = vmatmul.mubr.f32.gmra.mxu0 %v384
        %v563 = vpop.f32.mrf.mxu0
        %v564 = vadd.f32 0.0, %v563
        %v565 = vpop.f32.mrf.mxu0
        %566 = vmatprep.mubr.f32.mxu0 0.0
        %567 = vmatmul.mubr.f32.gmra.mxu0 %v387
        %v568 = vpop.f32.mrf.mxu0
        %v569 = vadd.f32 0.0, %v568
        %v570 = vpop.f32.mrf.mxu0
        %571 = vmatprep.mubr.f32.mxu0 0.0
        %572 = vmatmul.mubr.f32.gmra.mxu0 %v390
        %v573 = vpop.f32.mrf.mxu0
        %v574 = vadd.f32 0.0, %v573
        %v575 = vpop.f32.mrf.mxu0
        %576 = vmatprep.mubr.f32.mxu0 0.0
        %577 = vmatmul.mubr.f32.gmra.mxu0 %v393
        %v578 = vpop.f32.mrf.mxu0
        %v579 = vadd.f32 0.0, %v578
        %v580 = vpop.f32.mrf.mxu0
        %581 = vmatprep.mubr.f32.mxu0 0.0
        %582 = vmatmul.mubr.f32.gmra.mxu0 %v396
        %v583 = vpop.f32.mrf.mxu0
        %v584 = vadd.f32 0.0, %v583
        %v585 = vpop.f32.mrf.mxu0
        %586 = vmatprep.mubr.f32.mxu0 0.0
        %587 = vmatmul.mubr.f32.gmra.mxu0 %v399
        %v588 = vpop.f32.mrf.mxu0
        %v589 = vadd.f32 0.0, %v588
        %v590 = vpop.f32.mrf.mxu0
        %591 = vmatprep.mubr.f32.mxu0 0.0
        %592 = vmatmul.mubr.f32.gmra.mxu0 %v402
        %v593 = vpop.f32.mrf.mxu0
        %v594 = vadd.f32 0.0, %v593
        %v595 = vpop.f32.mrf.mxu0
        %596 = vdwg.mxu0
        %597 = vmax.xlane.f32.xlu0 %v519
        %v598 = vpop.xlane.xlu0 %597
        %599 = vmax.xlane.f32.xlu0 %v524
        %v600 = vpop.xlane.xlu0 %599
        %601 = vmax.xlane.f32.xlu0 %v529
        %v602 = vpop.xlane.xlu0 %601
        %603 = vmax.xlane.f32.xlu0 %v534
        %v604 = vpop.xlane.xlu0 %603
        %605 = vmax.xlane.f32.xlu0 %v539
        %v606 = vpop.xlane.xlu0 %605
        %607 = vmax.xlane.f32.xlu0 %v544
        %v608 = vpop.xlane.xlu0 %607
        %609 = vmax.xlane.f32.xlu0 %v549
        %v610 = vpop.xlane.xlu0 %609
        %611 = vmax.xlane.f32.xlu0 %v554
        %v612 = vpop.xlane.xlu0 %611
        %613 = vmax.xlane.f32.xlu0 %v559
        %v614 = vpop.xlane.xlu0 %613
        %615 = vmax.xlane.f32.xlu0 %v564
        %v616 = vpop.xlane.xlu0 %615
        %617 = vmax.xlane.f32.xlu0 %v569
        %v618 = vpop.xlane.xlu0 %617
        %619 = vmax.xlane.f32.xlu0 %v574
        %v620 = vpop.xlane.xlu0 %619
        %621 = vmax.xlane.f32.xlu0 %v579
        %v622 = vpop.xlane.xlu0 %621
        %623 = vmax.xlane.f32.xlu0 %v584
        %v624 = vpop.xlane.xlu0 %623
        %625 = vmax.xlane.f32.xlu0 %v589
        %v626 = vpop.xlane.xlu0 %625
        %627 = vmax.xlane.f32.xlu0 %v594
        %v628 = vpop.xlane.xlu0 %627
        %v629 = vsub.f32 %v519, %v598
        %v630 = vsub.f32 %v524, %v600
        %v631 = vsub.f32 %v529, %v602
        %v632 = vsub.f32 %v534, %v604
        %v633 = vsub.f32 %v539, %v606
        %v634 = vsub.f32 %v544, %v608
        %v635 = vsub.f32 %v549, %v610
        %v636 = vsub.f32 %v554, %v612
        %v637 = vsub.f32 %v559, %v614
        %v638 = vsub.f32 %v564, %v616
        %v639 = vsub.f32 %v569, %v618
        %v640 = vsub.f32 %v574, %v620
        %v641 = vsub.f32 %v579, %v622
        %v642 = vsub.f32 %v584, %v624
        %v643 = vsub.f32 %v589, %v626
        %v644 = vsub.f32 %v594, %v628
        %v645 = vmul.f32 %v629, 1.442695
        %v646 = vpow.pop %v645
        %v647 = vmul.f32 %v630, 1.442695
        %v648 = vpow.pop %v647
        %v649 = vmul.f32 %v631, 1.442695
        %v650 = vpow.pop %v649
        %v651 = vmul.f32 %v632, 1.442695
        %v652 = vpow.pop %v651
        %v653 = vmul.f32 %v633, 1.442695
        %v654 = vpow.pop %v653
        %v655 = vmul.f32 %v634, 1.442695
        %v656 = vpow.pop %v655
        %v657 = vmul.f32 %v635, 1.442695
        %v658 = vpow.pop %v657
        %v659 = vmul.f32 %v636, 1.442695
        %v660 = vpow.pop %v659
        %v661 = vmul.f32 %v637, 1.442695
        %v662 = vpow.pop %v661
        %v663 = vmul.f32 %v638, 1.442695
        %v664 = vpow.pop %v663
        %v665 = vmul.f32 %v639, 1.442695
        %v666 = vpow.pop %v665
        %v667 = vmul.f32 %v640, 1.442695
        %v668 = vpow.pop %v667
        %v669 = vmul.f32 %v641, 1.442695
        %v670 = vpow.pop %v669
        %v671 = vmul.f32 %v642, 1.442695
        %v672 = vpow.pop %v671
        %v673 = vmul.f32 %v643, 1.442695
        %v674 = vpow.pop %v673
        %v675 = vmul.f32 %v644, 1.442695
        %v676 = vpow.pop %v675
        %677 = vadd.xlane.f32.xlu0 %v646
        %v678 = vpop.xlane.xlu0 %677
        %679 = vadd.xlane.f32.xlu0 %v648
        %v680 = vpop.xlane.xlu0 %679
        %681 = vadd.xlane.f32.xlu0 %v650
        %v682 = vpop.xlane.xlu0 %681
        %683 = vadd.xlane.f32.xlu0 %v652
        %v684 = vpop.xlane.xlu0 %683
        %685 = vadd.xlane.f32.xlu0 %v654
        %v686 = vpop.xlane.xlu0 %685
        %687 = vadd.xlane.f32.xlu0 %v656
        %v688 = vpop.xlane.xlu0 %687
        %689 = vadd.xlane.f32.xlu0 %v658
        %v690 = vpop.xlane.xlu0 %689
        %691 = vadd.xlane.f32.xlu0 %v660
        %v692 = vpop.xlane.xlu0 %691
        %693 = vadd.xlane.f32.xlu0 %v662
        %v694 = vpop.xlane.xlu0 %693
        %695 = vadd.xlane.f32.xlu0 %v664
        %v696 = vpop.xlane.xlu0 %695
        %697 = vadd.xlane.f32.xlu0 %v666
        %v698 = vpop.xlane.xlu0 %697
        %699 = vadd.xlane.f32.xlu0 %v668
        %v700 = vpop.xlane.xlu0 %699
        %701 = vadd.xlane.f32.xlu0 %v670
        %v702 = vpop.xlane.xlu0 %701
        %703 = vadd.xlane.f32.xlu0 %v672
        %v704 = vpop.xlane.xlu0 %703
        %705 = vadd.xlane.f32.xlu0 %v674
        %v706 = vpop.xlane.xlu0 %705
        %707 = vadd.xlane.f32.xlu0 %v676
        %v708 = vpop.xlane.xlu0 %707
        %v709 = vrcp.pop %v678
        %v710 = vrcp.pop %v680
        %v711 = vrcp.pop %v682
        %v712 = vrcp.pop %v684
        %v713 = vrcp.pop %v686
        %v714 = vrcp.pop %v688
        %v715 = vrcp.pop %v690
        %v716 = vrcp.pop %v692
        %v717 = vrcp.pop %v694
        %v718 = vrcp.pop %v696
        %v719 = vrcp.pop %v698
        %v720 = vrcp.pop %v700
        %v721 = vrcp.pop %v702
        %v722 = vrcp.pop %v704
        %v723 = vrcp.pop %v706
        %v724 = vrcp.pop %v708
        %v725 = vmul.f32 %v646, %v709
        %v726 = vmul.f32 %v648, %v710
        %v727 = vmul.f32 %v650, %v711
        %v728 = vmul.f32 %v652, %v712
        %v729 = vmul.f32 %v654, %v713
        %v730 = vmul.f32 %v656, %v714
        %v731 = vmul.f32 %v658, %v715
        %v732 = vmul.f32 %v660, %v716
        %v733 = vmul.f32 %v662, %v717
        %v734 = vmul.f32 %v664, %v718
        %v735 = vmul.f32 %v666, %v719
        %v736 = vmul.f32 %v668, %v720
        %v737 = vmul.f32 %v670, %v721
        %v738 = vmul.f32 %v672, %v722
        %v739 = vmul.f32 %v674, %v723
        %v740 = vmul.f32 %v676, %v724
        %741 = vmatprep.subr.mxu0 0.0
        %742 = vmatpush1.msra.mxu0 %v354
        %743 = vmatprep.subr.mxu0 0.0
        %744 = vmatpush1.msra.mxu0 %v353
        %745 = vmatprep.subr.mxu0 0.0
        %746 = vmatpush1.msra.mxu0 %v352
        %747 = vmatprep.subr.mxu0 0.0
        %748 = vmatpush1.msra.mxu0 %v351
        %749 = vmatprep.subr.mxu0 0.0
        %750 = vmatpush1.msra.mxu0 %v350
        %751 = vmatprep.subr.mxu0 0.0
        %752 = vmatpush1.msra.mxu0 %v349
        %753 = vmatprep.subr.mxu0 0.0
        %754 = vmatpush1.msra.mxu0 %v348
        %755 = vmatprep.subr.mxu0 0.0
        %756 = vmatpush1.msra.mxu0 %v347
        %757 = vmatprep.subr.mxu0 0.0
        %758 = vmatpush1.msra.mxu0 %v346
        %759 = vmatprep.subr.mxu0 0.0
        %760 = vmatpush1.msra.mxu0 %v345
        %761 = vmatprep.subr.mxu0 0.0
        %762 = vmatpush1.msra.mxu0 %v344
        %763 = vmatprep.subr.mxu0 0.0
        %764 = vmatpush1.msra.mxu0 %v343
        %765 = vmatprep.subr.mxu0 0.0
        %766 = vmatpush1.msra.mxu0 %v342
        %767 = vmatprep.subr.mxu0 0.0
        %768 = vmatpush1.msra.mxu0 %v341
        %769 = vmatprep.subr.mxu0 0.0
        %770 = vmatpush1.msra.mxu0 %v340
        %771 = vmatprep.subr.mxu0 0.0
        %772 = vmatpush1.msra.mxu0 %v339
        %773 = vmatprep.subr.mxu0 0.0
        %774 = vmatpush2.msra.mxu0 0.0
        %775 = vmatprep.subr.mxu0 0.0
        %776 = vmatpush2.msra.mxu0 0.0
        %777 = vmatprep.subr.mxu0 0.0
        %778 = vmatpush2.msra.mxu0 0.0
        %779 = vmatprep.subr.mxu0 0.0
        %780 = vmatpush2.msra.mxu0 0.0
        %781 = vmatprep.subr.mxu0 0.0
        %782 = vmatpush2.msra.mxu0 0.0
        %783 = vmatprep.subr.mxu0 0.0
        %784 = vmatpush2.msra.mxu0 0.0
        %785 = vmatprep.subr.mxu0 0.0
        %786 = vmatpush2.msra.mxu0 0.0
        %787 = vmatprep.subr.mxu0 0.0
        %788 = vmatpush2.msra.mxu0 0.0
        %789 = vmatprep.subr.mxu0 0.0
        %790 = vmatpush2.msra.mxu0 0.0
        %791 = vmatprep.subr.mxu0 0.0
        %792 = vmatpush2.msra.mxu0 0.0
        %793 = vmatprep.subr.mxu0 0.0
        %794 = vmatpush2.msra.mxu0 0.0
        %795 = vmatprep.subr.mxu0 0.0
        %796 = vmatpush2.msra.mxu0 0.0
        %797 = vmatprep.subr.mxu0 0.0
        %798 = vmatpush2.msra.mxu0 0.0
        %799 = vmatprep.subr.mxu0 0.0
        %800 = vmatpush2.msra.mxu0 0.0
        %801 = vmatprep.subr.mxu0 0.0
        %802 = vmatpush2.msra.mxu0 0.0
        %803 = vmatprep.subr.mxu0 0.0
        %804 = vmatpush2.msra.mxu0 0.0
        %805 = vmatprep.mubr.f32.mxu0 0.0
        %806 = vmatmul.mubr.f32.gmra.mxu0 %v725
        %v807 = vpop.f32.mrf.mxu0
        %v808 = vadd.f32 0.0, %v807
        %v809 = vpop.f32.mrf.mxu0
        %810 = vmatprep.mubr.f32.mxu0 0.0
        %811 = vmatmul.mubr.f32.gmra.mxu0 %v726
        %v812 = vpop.f32.mrf.mxu0
        %v813 = vadd.f32 0.0, %v812
        %v814 = vpop.f32.mrf.mxu0
        %815 = vmatprep.mubr.f32.mxu0 0.0
        %816 = vmatmul.mubr.f32.gmra.mxu0 %v727
        %v817 = vpop.f32.mrf.mxu0
        %v818 = vadd.f32 0.0, %v817
        %v819 = vpop.f32.mrf.mxu0
        %820 = vmatprep.mubr.f32.mxu0 0.0
        %821 = vmatmul.mubr.f32.gmra.mxu0 %v728
        %v822 = vpop.f32.mrf.mxu0
        %v823 = vadd.f32 0.0, %v822
        %v824 = vpop.f32.mrf.mxu0
        %825 = vmatprep.mubr.f32.mxu0 0.0
        %826 = vmatmul.mubr.f32.gmra.mxu0 %v729
        %v827 = vpop.f32.mrf.mxu0
        %v828 = vadd.f32 0.0, %v827
        %v829 = vpop.f32.mrf.mxu0
        %830 = vmatprep.mubr.f32.mxu0 0.0
        %831 = vmatmul.mubr.f32.gmra.mxu0 %v730
        %v832 = vpop.f32.mrf.mxu0
        %v833 = vadd.f32 0.0, %v832
        %v834 = vpop.f32.mrf.mxu0
        %835 = vmatprep.mubr.f32.mxu0 0.0
        %836 = vmatmul.mubr.f32.gmra.mxu0 %v731
        %v837 = vpop.f32.mrf.mxu0
        %v838 = vadd.f32 0.0, %v837
        %v839 = vpop.f32.mrf.mxu0
        %840 = vmatprep.mubr.f32.mxu0 0.0
        %841 = vmatmul.mubr.f32.gmra.mxu0 %v732
        %v842 = vpop.f32.mrf.mxu0
        %v843 = vadd.f32 0.0, %v842
        %v844 = vpop.f32.mrf.mxu0
        %845 = vmatprep.mubr.f32.mxu0 0.0
        %846 = vmatmul.mubr.f32.gmra.mxu0 %v733
        %v847 = vpop.f32.mrf.mxu0
        %v848 = vadd.f32 0.0, %v847
        %v849 = vpop.f32.mrf.mxu0
        %850 = vmatprep.mubr.f32.mxu0 0.0
        %851 = vmatmul.mubr.f32.gmra.mxu0 %v734
        %v852 = vpop.f32.mrf.mxu0
        %v853 = vadd.f32 0.0, %v852
        %v854 = vpop.f32.mrf.mxu0
        %855 = vmatprep.mubr.f32.mxu0 0.0
        %856 = vmatmul.mubr.f32.gmra.mxu0 %v735
        %v857 = vpop.f32.mrf.mxu0
        %v858 = vadd.f32 0.0, %v857
        %v859 = vpop.f32.mrf.mxu0
        %860 = vmatprep.mubr.f32.mxu0 0.0
        %861 = vmatmul.mubr.f32.gmra.mxu0 %v736
        %v862 = vpop.f32.mrf.mxu0
        %v863 = vadd.f32 0.0, %v862
        %v864 = vpop.f32.mrf.mxu0
        %865 = vmatprep.mubr.f32.mxu0 0.0
        %866 = vmatmul.mubr.f32.gmra.mxu0 %v737
        %v867 = vpop.f32.mrf.mxu0
        %v868 = vadd.f32 0.0, %v867
        %v869 = vpop.f32.mrf.mxu0
        %870 = vmatprep.mubr.f32.mxu0 0.0
        %871 = vmatmul.mubr.f32.gmra.mxu0 %v738
        %v872 = vpop.f32.mrf.mxu0
        %v873 = vadd.f32 0.0, %v872
        %v874 = vpop.f32.mrf.mxu0
        %875 = vmatprep.mubr.f32.mxu0 0.0
        %876 = vmatmul.mubr.f32.gmra.mxu0 %v739
        %v877 = vpop.f32.mrf.mxu0
        %v878 = vadd.f32 0.0, %v877
        %v879 = vpop.f32.mrf.mxu0
        %880 = vmatprep.mubr.f32.mxu0 0.0
        %881 = vmatmul.mubr.f32.gmra.mxu0 %v740
        %v882 = vpop.f32.mrf.mxu0
        %v883 = vadd.f32 0.0, %v882
        %v884 = vpop.f32.mrf.mxu0
        %885 = vdwg.mxu0
        %886 = vst.msk [vmem:[%s288] sm:$0xff] %vm355, %v808
        %887 = vst.msk [vmem:[%s288 + $0x8] sm:$0xff] %vm355, %v813
        %888 = vst.msk [vmem:[%s288 + $0x10] sm:$0xff] %vm355, %v818
        %889 = vst.msk [vmem:[%s288 + $0x18] sm:$0xff] %vm355, %v823
        %890 = vst.msk [vmem:[%s288 + $0x20] sm:$0xff] %vm355, %v828
        %891 = vst.msk [vmem:[%s288 + $0x28] sm:$0xff] %vm355, %v833
        %892 = vst.msk [vmem:[%s288 + $0x30] sm:$0xff] %vm355, %v838
        %893 = vst.msk [vmem:[%s288 + $0x38] sm:$0xff] %vm355, %v843
        %894 = vst.msk [vmem:[%s288 + $0x40] sm:$0xff] %vm355, %v848
        %895 = vst.msk [vmem:[%s288 + $0x48] sm:$0xff] %vm355, %v853
        %896 = vst.msk [vmem:[%s288 + $0x50] sm:$0xff] %vm355, %v858
        %897 = vst.msk [vmem:[%s288 + $0x58] sm:$0xff] %vm355, %v863
        %898 = vst.msk [vmem:[%s288 + $0x60] sm:$0xff] %vm355, %v868
        %899 = vst.msk [vmem:[%s288 + $0x68] sm:$0xff] %vm355, %v873
        %900 = vst.msk [vmem:[%s288 + $0x70] sm:$0xff] %vm355, %v878
        %901 = vst.msk [vmem:[%s288 + $0x78] sm:$0xff] %vm355, %v883
        %902 = vst [vmem:[%s259] sm:$0xff] %v725
        %903 = vst [vmem:[%s259 + $0x8] sm:$0xff] %v726
        %904 = vst [vmem:[%s259 + $0x10] sm:$0xff] %v727
        %905 = vst [vmem:[%s259 + $0x18] sm:$0xff] %v728
        %906 = vst [vmem:[%s259 + $0x20] sm:$0xff] %v729
        %907 = vst [vmem:[%s259 + $0x28] sm:$0xff] %v730
        %908 = vst [vmem:[%s259 + $0x30] sm:$0xff] %v731
        %909 = vst [vmem:[%s259 + $0x38] sm:$0xff] %v732
        %910 = vst [vmem:[%s259 + $0x40] sm:$0xff] %v733
        %911 = vst [vmem:[%s259 + $0x48] sm:$0xff] %v734
        %912 = vst [vmem:[%s259 + $0x50] sm:$0xff] %v735
        %913 = vst [vmem:[%s259 + $0x58] sm:$0xff] %v736
        %914 = vst [vmem:[%s259 + $0x60] sm:$0xff] %v737
        %915 = vst [vmem:[%s259 + $0x68] sm:$0xff] %v738
        %916 = vst [vmem:[%s259 + $0x70] sm:$0xff] %v739
        %917 = vst [vmem:[%s259 + $0x78] sm:$0xff] %v740
        %s918 = smul.u32 16, %s24
        %p919 = scmp.lt.s32.totalorder %s23, 3
        %s920 = scalar_select %p919, %s23, 3
        %p921 = scmp.lt.s32.totalorder %s918, 15
        %s922 = scalar_select %p921, %s918, 15
        %s923 = smul.addr %s920, 16
        %s924 = sadd.s32 %s922, %s923
        %s925 = smul.addr %s924, 8
        %s926 = scalar_lea.vmem %s3, %s925
        %s927 = sand.u32 %s149, 1
        %s928 = scalar_lea.sflag [#allocation3], %s927
        %s929 = sand.u32 %s149, 1
        %s930 = smul.addr %s929, 128
        %s931 = scalar_lea.vmem [#allocation2], %s930
        // Predicated region
        $region33: #{scaled_dot_product_attention.1} parent=31 // pred_check
          %p932 = pneg %p131
        $region34: #{scaled_dot_product_attention.1} parent=31 // pred_check_branch
          %934 = sbr.rel (%p932) target = $region36
        $region35: #{scaled_dot_product_attention.1} parent=31 // pred_region
          %s935 = smul.u32 16, %s24
        $region36: #{scaled_dot_product_attention.1} parent=31 // pred_fallthru
          _
        // Predicated region
        $region37: #{scaled_dot_product_attention.1} parent=31 // pred_check
          %p936 = pneg %p159
        $region38: #{scaled_dot_product_attention.1} parent=31 // pred_check_branch
          %938 = sbr.rel (%p936) target = $region40
        $region39: #{scaled_dot_product_attention.1} parent=31 // pred_region
          %s939 = smul.u32 16, %s24
          %s941 = ssub.s32 2048, 2048
          %942 = vsyncadd %s928, %s941
          %s943 = smul.addr %s23, 16
          %s944 = sadd.s32 %s939, %s943
          %s945 = smul.addr %s944, 128
          %s946 = scalar_lea.hbm %s4, %s945
          %s947 = sshll.u32 %s931, 4
          %s948 = int_to_ptr.vmem [resolvable:$true] %s947
          %953 = dma.vmem_to_hbm [thread:$0]  %s948, 2048, %s946, %s928, 128, 128, 8
        $region40: #{scaled_dot_product_attention.1} parent=31 // pred_fallthru
          _
      $region32: #{scaled_dot_product_attention.1} parent=5 // pred_fallthru
        _
      %p954 = scmp.le.s32.totalorder 2, %s14
      // Predicated region
      $region41: #{scaled_dot_product_attention.1} parent=5 // pred_check
        %p955 = pneg %p954
      $region42: #{scaled_dot_product_attention.1} parent=5 // pred_check_branch
        %957 = sbr.rel (%p955) target = $region44
      $region43: #{scaled_dot_product_attention.1} parent=5 // pred_region
        %s958 = ssub.s32 %s14, 2
        // Predicated region
        $region45: #{scaled_dot_product_attention.1} parent=43 // pred_check
          %p959 = pneg %p137
        $region46: #{scaled_dot_product_attention.1} parent=43 // pred_check_branch
          %961 = sbr.rel (%p959) target = $region48
        $region47: #{scaled_dot_product_attention.1} parent=43 // pred_region
          %s962 = smul.u32 16, %s26
          %p963 = scmp.lt.s32.totalorder %s25, 3
          %s964 = scalar_select %p963, %s25, 3
          %p965 = scmp.lt.s32.totalorder %s962, 15
          %s966 = scalar_select %p965, %s962, 15
          %s967 = smul.addr %s964, 16
          %s968 = sadd.s32 %s966, %s967
          %s969 = smul.addr %s968, 8
          %s970 = scalar_lea.vmem %s3, %s969
        $region48: #{scaled_dot_product_attention.1} parent=43 // pred_fallthru
          _
        // Predicated region
        $region49: #{scaled_dot_product_attention.1} parent=43 // pred_check
          %p971 = pneg %p165
        $region50: #{scaled_dot_product_attention.1} parent=43 // pred_check_branch
          %973 = sbr.rel (%p971) target = $region52
        $region51: #{scaled_dot_product_attention.1} parent=43 // pred_region
          %s974 = sand.u32 %s150, 1
          %s975 = scalar_lea.sflag [#allocation3], %s974
          %s976 = sand.u32 %s150, 1
          %s977 = smul.addr %s976, 128
          %s978 = scalar_lea.vmem [#allocation2], %s977
          %979 = dma.done %s975, 2048
        $region52: #{scaled_dot_product_attention.1} parent=43 // pred_fallthru
          _
      $region44: #{scaled_dot_product_attention.1} parent=5 // pred_fallthru
        _
    $region6: #{scaled_dot_product_attention.1} parent=1 // loop_footer
      %s18 = sadd.s32 1, %s14
    $region7: #{scaled_dot_product_attention.1} parent=1 // loop_footer_branch
      %13 = sbr.rel target = $region3
    $region8: #{scaled_dot_product_attention.1} parent=1 // loop_exit
      _
    %980 = vsyncpa [#allocation3], 1
    %s981 = scalar_lea.sflag [#allocation3], 1
    %982 = vsyncpa %s981, 1

</llo_original>
